<compile_context>
chip_gen: v7x
topology: tpu7x:2x2x1
jax: 0.10.0
libtpu: 0.0.40
codegen_flags: <defaults>
</compile_context>

<pallas_src>
import jax
import jax.numpy as jnp
from jax import lax
from jax.experimental import pallas as pl
from jax.experimental.pallas import tpu as pltpu


STATE_SIZE = 26
H1 = 128
H2 = 256
OUT = 1
MAX_TILE_B = 2048   # ~4 MB f32 temporaries per tile -> fits comfortably on v5e/v6e/v7x


def critic_kernel(x_ref, w1_ref, b1_ref, w2_ref, b2_ref, w3_ref, b3_ref, o_ref):
    # Layer 1: (tb, 26) f32 @ (26, 128) f32 -> f32. K is tiny; f32 keeps input precision.
    h1 = jnp.dot(x_ref[...], w1_ref[...], preferred_element_type=jnp.float32)
    h1 = jnp.maximum(h1 + b1_ref[...], 0.0)
    # Layer 2: (tb, 128) bf16 @ (128, 256) bf16 -> f32 accumulation (MXU-native).
    h2 = jnp.dot(h1.astype(jnp.bfloat16), w2_ref[...],
                 preferred_element_type=jnp.float32)
    h2 = jnp.maximum(h2 + b2_ref[...], 0.0)
    # Layer 3 (out=1): contract W3 (1, 256) against h2's feature axis -> (1, tb).
    # Lane-dense result => unmasked vector stores and a dense output DMA.
    vt = lax.dot_general(w3_ref[...], h2,
                         dimension_numbers=(((1,), (1,)), ((), ())),
                         preferred_element_type=jnp.float32)
    o_ref[...] = vt + b3_ref[0]


def _round_up(x, m):
    return ((x + m - 1) // m) * m


def _pick_tile_b(batch, max_tile=MAX_TILE_B):
    if batch <= 512:
        return _round_up(batch, 8)                      # single tile, minimal padding
    # >= 2 tiles (keeps both v7x TensorCores busy), each a 256-multiple, capped.
    return min(max_tile, _round_up(pl.cdiv(batch, 2), 256))


def critic_forward(state, params):
    """state: (B, 26) float32.  Returns value: (B, 1) float32."""
    w1, b1, w2, b2, w3, b3 = params  # w1:(26,128)f32 b1:(1,128)f32 w2:(128,256)bf16
    #                                  b2:(1,256)f32 w3:(1,256)f32 b3:(1,)f32
    B = state.shape[0]
    tb = _pick_tile_b(B)
    num_tiles = pl.cdiv(B, tb)

    flops = 2 * B * (STATE_SIZE * H1 + H1 * H2 + H2)
    bytes_accessed = (
        B * STATE_SIZE * 4 + w1.size * 4 + b1.size * 4 + w2.size * 2
        + b2.size * 4 + w3.size * 4 + b3.size * 4 + num_tiles * tb * 4
    )

    out = pl.pallas_call(
        critic_kernel,
        out_shape=jax.ShapeDtypeStruct((num_tiles, tb), jnp.float32),
        grid=(num_tiles,),
        in_specs=[
            pl.BlockSpec((tb, STATE_SIZE), lambda i: (i, 0)),      # state: tiled over batch
            pl.BlockSpec((STATE_SIZE, H1), lambda i: (0, 0)),      # W1: resident
            pl.BlockSpec((1, H1), lambda i: (0, 0)),               # b1: resident
            pl.BlockSpec((H1, H2), lambda i: (0, 0)),              # W2: resident
            pl.BlockSpec((1, H2), lambda i: (0, 0)),               # b2: resident
            pl.BlockSpec((1, H2), lambda i: (0, 0)),               # W3 row: resident
            pl.BlockSpec(memory_space=pltpu.MemorySpace.SMEM),     # b3: SMEM scalar
        ],
        out_specs=pl.BlockSpec((1, tb), lambda i: (i, 0)),          # lane-dense output row
        compiler_params=pltpu.CompilerParams(
            dimension_semantics=("parallel",),   # v7x: shard batch tiles across 2 TCs
        ),
        cost_estimate=pl.CostEstimate(
            flops=flops, transcendentals=0, bytes_accessed=bytes_accessed
        ),
    )(state, w1, b1, w2, b2, w3, b3)

    values = out.reshape(num_tiles * tb, OUT)
    if num_tiles * tb != B:
        values = values[:B]          # drop ragged-tile rows (garbage from masked blocks)
    return values


def init_params(key):
    """PyTorch nn.Linear-style init (U[-1/sqrt(fan_in), 1/sqrt(fan_in)]).

    Weights are stored as [in, out] so the kernel computes x @ W + b.  W2 (the
    only sizeable matmul operand) is bf16 for the MXU; everything else stays f32.
    """
    keys = jax.random.split(key, 6)

    def linear(kw, kb, fan_in, fan_out):
        bound = 1.0 / jnp.sqrt(float(fan_in))
        w = jax.random.uniform(kw, (fan_in, fan_out), jnp.float32, -bound, bound)
        b = jax.random.uniform(kb, (1, fan_out), jnp.float32, -bound, bound)
        return w, b

    w1, b1 = linear(keys[0], keys[1], STATE_SIZE, H1)
    w2, b2 = linear(keys[2], keys[3], H1, H2)
    w3, b3 = linear(keys[4], keys[5], H2, OUT)

    return (
        w1,                          # (26, 128)  f32
        b1,                          # (1, 128)   f32
        w2.astype(jnp.bfloat16),     # (128, 256) bf16
        b2,                          # (1, 256)   f32
        w3.T,                        # (1, 256)   f32  (row form for the layer-3 contraction)
        b3.reshape((1,)),            # (1,)       f32  (SMEM scalar)
    )


if __name__ == "__main__":
    key = jax.random.PRNGKey(0)
    pkey, xkey = jax.random.split(key)
    params = init_params(pkey)

    B = 8  # small batch of rollout states
    state = jax.random.normal(xkey, (B, STATE_SIZE), jnp.float32)

    value = jax.block_until_ready(critic_forward(state, params))

    # Plain-JAX reference (mirrors the kernel's bf16 rounding on layer 2).
    w1, b1, w2, b2, w3, b3 = params
    h1 = jnp.maximum(state @ w1 + b1, 0.0)
    h1b = h1.astype(jnp.bfloat16).astype(jnp.float32)
    h2 = jnp.maximum(h1b @ w2.astype(jnp.float32) + b2, 0.0)
    ref = h2 @ w3.T + b3

    assert value.shape == (B, OUT), value.shape
    # bf16 layer-2 inputs -> slightly looser tolerance than a pure-f32 path.
    assert jnp.allclose(value, ref, atol=2e-2, rtol=2e-2), (
        f"max abs err {jnp.max(jnp.abs(value - ref))}"
    )

    print("KERNEL_OK")
</pallas_src>

<mosaic_0001>
module attributes {stable_mosaic.version = 11 : i64} {
  func.func @critic_kernel(%arg0: i32, %arg1: memref<8x26xf32, #tpu.memory_space<vmem>>, %arg2: memref<26x128xf32, #tpu.memory_space<vmem>>, %arg3: memref<1x128xf32, #tpu.memory_space<vmem>>, %arg4: memref<128x256xbf16, #tpu.memory_space<vmem>>, %arg5: memref<1x256xf32, #tpu.memory_space<vmem>>, %arg6: memref<1x256xf32, #tpu.memory_space<vmem>>, %arg7: memref<1xf32, #tpu.memory_space<smem>>, %arg8: memref<1x8xf32, #tpu.memory_space<vmem>>) attributes {dimension_semantics = [#tpu.dimension_semantics<parallel>], iteration_bounds = array<i64: 1>, scalar_prefetch = 0 : i64, scratch_operands = 0 : i64, tpu.core_type = #tpu.core_type<tc>, window_params = [{transform_indices = @transform_0, window_bounds = array<i64: 8, 26>}, {pipeline_mode = #tpu.pipeline_mode<synchronous>, transform_indices = @transform_1, window_bounds = array<i64: 26, 128>}, {pipeline_mode = #tpu.pipeline_mode<synchronous>, transform_indices = @transform_2, window_bounds = array<i64: 1, 128>}, {pipeline_mode = #tpu.pipeline_mode<synchronous>, transform_indices = @transform_3, window_bounds = array<i64: 128, 256>}, {pipeline_mode = #tpu.pipeline_mode<synchronous>, transform_indices = @transform_4, window_bounds = array<i64: 1, 256>}, {pipeline_mode = #tpu.pipeline_mode<synchronous>, transform_indices = @transform_5, window_bounds = array<i64: 1, 256>}, {transform_indices = @transform_6, window_bounds = array<i64: 1>}, {transform_indices = @transform_7, window_bounds = array<i64: 1, 8>}]} {
    %c0 = arith.constant 0 : index
    %c0_0 = arith.constant 0 : index
    %0 = vector.load %arg1[%c0, %c0_0] : memref<8x26xf32, #tpu.memory_space<vmem>>, vector<8x26xf32>
    %c0_1 = arith.constant 0 : index
    %c0_2 = arith.constant 0 : index
    %1 = vector.load %arg2[%c0_1, %c0_2] : memref<26x128xf32, #tpu.memory_space<vmem>>, vector<26x128xf32>
    %cst = arith.constant dense<0.000000e+00> : vector<8x128xf32>
    %2 = tpu.matmul %0, %1, %cst {dimension_numbers = #tpu.dot_dimension_numbers<[1], [0], [0], [1], [0, 0, 1, 1], [], []>} : vector<8x26xf32>, vector<26x128xf32>, vector<8x128xf32> -> vector<8x128xf32>
    %c0_3 = arith.constant 0 : index
    %c0_4 = arith.constant 0 : index
    %3 = vector.load %arg3[%c0_3, %c0_4] : memref<1x128xf32, #tpu.memory_space<vmem>>, vector<1x128xf32>
    %4 = vector.broadcast %3 : vector<1x128xf32> to vector<8x128xf32>
    %5 = arith.addf %2, %4 : vector<8x128xf32>
    %cst_5 = arith.constant 0.000000e+00 : f32
    %6 = vector.broadcast %cst_5 : f32 to vector<8x128xf32>
    %7 = arith.maximumf %5, %6 : vector<8x128xf32>
    %8 = arith.truncf %7 : vector<8x128xf32> to vector<8x128xbf16>
    %c0_6 = arith.constant 0 : index
    %c0_7 = arith.constant 0 : index
    %9 = vector.load %arg4[%c0_6, %c0_7] : memref<128x256xbf16, #tpu.memory_space<vmem>>, vector<128x256xbf16>
    %cst_8 = arith.constant dense<0.000000e+00> : vector<8x256xf32>
    %10 = tpu.matmul %8, %9, %cst_8 {dimension_numbers = #tpu.dot_dimension_numbers<[1], [0], [0], [1], [0, 0, 1, 1], [], []>} : vector<8x128xbf16>, vector<128x256xbf16>, vector<8x256xf32> -> vector<8x256xf32>
    %c0_9 = arith.constant 0 : index
    %c0_10 = arith.constant 0 : index
    %11 = vector.load %arg5[%c0_9, %c0_10] : memref<1x256xf32, #tpu.memory_space<vmem>>, vector<1x256xf32>
    %12 = vector.broadcast %11 : vector<1x256xf32> to vector<8x256xf32>
    %13 = arith.addf %10, %12 : vector<8x256xf32>
    %cst_11 = arith.constant 0.000000e+00 : f32
    %14 = vector.broadcast %cst_11 : f32 to vector<8x256xf32>
    %15 = arith.maximumf %13, %14 : vector<8x256xf32>
    %c0_12 = arith.constant 0 : index
    %c0_13 = arith.constant 0 : index
    %16 = vector.load %arg6[%c0_12, %c0_13] : memref<1x256xf32, #tpu.memory_space<vmem>>, vector<1x256xf32>
    %cst_14 = arith.constant dense<0.000000e+00> : vector<1x8xf32>
    %17 = tpu.matmul %16, %15, %cst_14 {dimension_numbers = #tpu.dot_dimension_numbers<[1], [1], [0], [0], [0, 0, 1, 0], [], []>} : vector<1x256xf32>, vector<8x256xf32>, vector<1x8xf32> -> vector<1x8xf32>
    %c0_15 = arith.constant 0 : index
    %18 = memref.load %arg7[%c0_15] : memref<1xf32, #tpu.memory_space<smem>>
    %19 = vector.broadcast %18 : f32 to vector<1x8xf32>
    %20 = arith.addf %17, %19 : vector<1x8xf32>
    %c0_16 = arith.constant 0 : index
    %c0_17 = arith.constant 0 : index
    %21 = vector.load %arg8[%c0_16, %c0_17] : memref<1x8xf32, #tpu.memory_space<vmem>>, vector<1x8xf32>
    tpu.vector_store %arg8[%c0_16, %c0_17], %20 {strides = array<i32>} : memref<1x8xf32, #tpu.memory_space<vmem>>, vector<1x8xf32>,
    return
  }
  func.func @transform_0(%arg0: i32) -> (i32, i32) {
    %c0_i32 = arith.constant 0 : i32
    %c0_i32_0 = arith.constant 0 : i32
    return %arg0, %c0_i32 : i32, i32
  }
  func.func @transform_1(%arg0: i32) -> (i32, i32) {
    %c0_i32 = arith.constant 0 : i32
    %c0_i32_0 = arith.constant 0 : i32
    %c0_i32_1 = arith.constant 0 : i32
    return %c0_i32, %c0_i32_0 : i32, i32
  }
  func.func @transform_2(%arg0: i32) -> (i32, i32) {
    %c0_i32 = arith.constant 0 : i32
    %c0_i32_0 = arith.constant 0 : i32
    %c0_i32_1 = arith.constant 0 : i32
    return %c0_i32, %c0_i32_0 : i32, i32
  }
  func.func @transform_3(%arg0: i32) -> (i32, i32) {
    %c0_i32 = arith.constant 0 : i32
    %c0_i32_0 = arith.constant 0 : i32
    %c0_i32_1 = arith.constant 0 : i32
    return %c0_i32, %c0_i32_0 : i32, i32
  }
  func.func @transform_4(%arg0: i32) -> (i32, i32) {
    %c0_i32 = arith.constant 0 : i32
    %c0_i32_0 = arith.constant 0 : i32
    %c0_i32_1 = arith.constant 0 : i32
    return %c0_i32, %c0_i32_0 : i32, i32
  }
  func.func @transform_5(%arg0: i32) -> (i32, i32) {
    %c0_i32 = arith.constant 0 : i32
    %c0_i32_0 = arith.constant 0 : i32
    %c0_i32_1 = arith.constant 0 : i32
    return %c0_i32, %c0_i32_0 : i32, i32
  }
  func.func @transform_6(%arg0: i32) -> i32 {
    %c0_i32 = arith.constant 0 : i32
    %c0_i32_0 = arith.constant 0 : i32
    return %c0_i32 : i32
  }
  func.func @transform_7(%arg0: i32) -> (i32, i32) {
    %c0_i32 = arith.constant 0 : i32
    %c0_i32_0 = arith.constant 0 : i32
    return %arg0, %c0_i32 : i32, i32
  }
}

</mosaic_0001>

<llo_original>
// kernel: tpu_custom_call.1
$region0: #{tpu_custom_call.1}
  #allocation0 [shape = 'u32[]', space=smem, size = 0x4, offset = 0x4, fixed_abs, tag = 'smem constant byte address 0x4 - core index']
  #allocation1 [shape = 'u32[144,128]{1,0:T(1,128)}', space=vmem, size = 0x12000, scoped, tag = 'internal scratch']
  #allocation2 [shape = 'f32[1]{0:T(128)S(6)}', space=smem, size = 0x200, scoped, tag = 'scoped memory for tpu_custom_call.1']
  %s0 = inlined_call_operand.hbm [shape: f32[8,26], index: 0, kind: input, shape index: {}]
  %s1 = inlined_call_operand.hbm [shape: f32[26,128], index: 1, kind: input, shape index: {}]
  %s2 = inlined_call_operand.vmem [shape: f32[1,128], index: 2, kind: input, shape index: {}]
  %s3 = inlined_call_operand.hbm [shape: bf16[128,256], index: 3, kind: input, shape index: {}]
  %s4 = inlined_call_operand.vmem [shape: f32[1,256], index: 4, kind: input, shape index: {}]
  %s5 = inlined_call_operand.vmem [shape: f32[1,256], index: 5, kind: input, shape index: {}]
  %s6 = inlined_call_operand.<no memory space> [shape: f32[1], index: 6, kind: input, shape index: {}]
  %s7 = inlined_call_operand.hbm [shape: f32[1,8], index: 7, kind: output, shape index: {}]
  %s8 = sld [smem:[#allocation0]]
  $region50: #{tpu_custom_call.1} parent=0
    _
  %s10 = ssub.s32 1, %s8
  %s11 = scalar_select 0, %s10, %s8
  %12 = sst [smem:[#allocation2]] %s6
  $region1: #{tpu_custom_call.1} parent=0
    #allocation3 [shape = 'u8[4096]{0}', space=vmem, size = 0x1000, scoped, tag = 'input window, operand 0, single buffered']
    #allocation4 [shape = 's32[1]{0}', space=sflag, size = 0x4, scoped, tag = 'scoped memory for tpu_custom_call.1']
    #allocation5 [shape = 's32[1]{0}', space=sflag, size = 0x4, scoped, tag = 'scoped memory for tpu_custom_call.1']
    #allocation6 [shape = 'u8[16384]{0}', space=vmem, size = 0x4000, scoped, tag = 'input window, operand 1, single buffered']
    #allocation7 [shape = 's32[1]{0}', space=sflag, size = 0x4, scoped, tag = 'scoped memory for tpu_custom_call.1']
    #allocation8 [shape = 'u8[65536]{0}', space=vmem, size = 0x10000, scoped, tag = 'input window, operand 3, single buffered']
    #allocation9 [shape = 'u8[512]{0}', space=vmem, size = 0x400, scoped, tag = 'output window, operand 0, single buffered']
    %13 = vsyncpa [#allocation4], 0
    %14 = vsyncpa [#allocation7], 0
    %15 = vsyncpa [#allocation5], 0
    // Predicated region
    $region2: #{tpu_custom_call.1} parent=1 // pred_check
      _
    $region3: #{tpu_custom_call.1} parent=1 // pred_check_branch
      %17 = sbr.rel (0) target = $region5
    $region4: #{tpu_custom_call.1} parent=1 // pred_region
      %s19 = ssub.s32 128, 128
      %20 = vsyncadd [#allocation4], %s19
      %s22 = sshll.u32 [#allocation3], 4
      %s23 = int_to_ptr.vmem [resolvable:$true] %s22
      %25 = dma.hbm_to_vmem [thread:$0]  %s0, 128, %s23, [#allocation4]
    $region5: #{tpu_custom_call.1} parent=1 // pred_fallthru
      _
    // Predicated region
    $region6: #{tpu_custom_call.1} parent=1 // pred_check
      _
    $region7: #{tpu_custom_call.1} parent=1 // pred_check_branch
      %27 = sbr.rel (0) target = $region9
    $region8: #{tpu_custom_call.1} parent=1 // pred_region
      %s29 = ssub.s32 512, 512
      %30 = vsyncadd [#allocation7], %s29
      %s31 = sshll.u32 [#allocation6], 4
      %s32 = int_to_ptr.vmem [resolvable:$true] %s31
      %37 = dma.hbm_to_vmem [thread:$0]  %s1, 512, %s32, [#allocation7], 128, 128, 8
    $region9: #{tpu_custom_call.1} parent=1 // pred_fallthru
      _
    // Predicated region
    $region10: #{tpu_custom_call.1} parent=1 // pred_check
      _
    $region11: #{tpu_custom_call.1} parent=1 // pred_check_branch
      %39 = sbr.rel (0) target = $region13
    $region12: #{tpu_custom_call.1} parent=1 // pred_region
      _
    $region13: #{tpu_custom_call.1} parent=1 // pred_fallthru
      _
    // Predicated region
    $region14: #{tpu_custom_call.1} parent=1 // pred_check
      _
    $region15: #{tpu_custom_call.1} parent=1 // pred_check_branch
      %41 = sbr.rel (0) target = $region17
    $region16: #{tpu_custom_call.1} parent=1 // pred_region
      %s43 = ssub.s32 2048, 2048
      %44 = vsyncadd [#allocation7], %s43
      %s45 = sshll.u32 [#allocation8], 4
      %s46 = int_to_ptr.vmem [resolvable:$true] %s45
      %51 = dma.hbm_to_vmem [thread:$0]  %s3, 2048, %s46, [#allocation7], 128, 128, 8
    $region17: #{tpu_custom_call.1} parent=1 // pred_fallthru
      _
    // Predicated region
    $region18: #{tpu_custom_call.1} parent=1 // pred_check
      _
    $region19: #{tpu_custom_call.1} parent=1 // pred_check_branch
      %53 = sbr.rel (0) target = $region21
    $region20: #{tpu_custom_call.1} parent=1 // pred_region
      _
    $region21: #{tpu_custom_call.1} parent=1 // pred_fallthru
      _
    // Predicated region
    $region22: #{tpu_custom_call.1} parent=1 // pred_check
      _
    $region23: #{tpu_custom_call.1} parent=1 // pred_check_branch
      %55 = sbr.rel (0) target = $region25
    $region24: #{tpu_custom_call.1} parent=1 // pred_region
      _
    $region25: #{tpu_custom_call.1} parent=1 // pred_fallthru
      _
    // Predicated region
    $region26: #{tpu_custom_call.1} parent=1 // pred_check
      _
    $region27: #{tpu_custom_call.1} parent=1 // pred_check_branch
      %57 = sbr.rel (0) target = $region29
    $region28: #{tpu_custom_call.1} parent=1 // pred_region
      _
    $region29: #{tpu_custom_call.1} parent=1 // pred_fallthru
      _
    // Predicated region
    $region30: #{tpu_custom_call.1} parent=1 // pred_check
      _
    $region31: #{tpu_custom_call.1} parent=1 // pred_check_branch
      %59 = sbr.rel (0) target = $region33
    $region32: #{tpu_custom_call.1} parent=1 // pred_region
      %60 = dma.done [#allocation4], 128
    $region33: #{tpu_custom_call.1} parent=1 // pred_fallthru
      _
    // Predicated region
    $region34: #{tpu_custom_call.1} parent=1 // pred_check
      _
    $region35: #{tpu_custom_call.1} parent=1 // pred_check_branch
      %62 = sbr.rel (0) target = $region37
    $region36: #{tpu_custom_call.1} parent=1 // pred_region
      %63 = dma.done [#allocation7], 512
    $region37: #{tpu_custom_call.1} parent=1 // pred_fallthru
      _
    // Predicated region
    $region38: #{tpu_custom_call.1} parent=1 // pred_check
      _
    $region39: #{tpu_custom_call.1} parent=1 // pred_check_branch
      %65 = sbr.rel (0) target = $region41
    $region40: #{tpu_custom_call.1} parent=1 // pred_region
      %66 = dma.done [#allocation7], 2048
    $region41: #{tpu_custom_call.1} parent=1 // pred_fallthru
      _
    %v68 = vld [vmem:[#allocation3] sm:$0xff]
    %v69 = vld [vmem:[#allocation6] sm:$0xff]
    %v70 = vld [vmem:[#allocation6 + $0x8] sm:$0xff]
    %v71 = vld [vmem:[#allocation6 + $0x10] sm:$0xff]
    %v72 = vld [vmem:[#allocation6 + $0x18] sm:$0x3]
    %v73 = vld [vmem:[%s2] sm:$0x1]
    %v75 = vlaneseq
    %v76 = vshrl.u32 %v75, 7
    %v77 = vsub.s32 0, %v76
    %v78 = vrot.slane %v73, %v77
    %vm80 = vcmask 211968
    %v82 = vsel %vm80, %v68, 0
    %vm84 = vcmask 1041408
    %v86 = vsel %vm84, %v72, 0
    %88 = vmatprep.subr.mxu0 0.0
    %89 = vmatpush1.msra.mxu0 %v69
    %90 = vmatprep.subr.mxu0 0.0
    %91 = vmatpush1.msra.mxu0 %v70
    %92 = vmatprep.subr.mxu0 0.0
    %93 = vmatpush1.msra.mxu0 %v71
    %94 = vmatprep.subr.mxu0 0.0
    %95 = vmatpush1.msra.mxu0 %v86
    %96 = vmatprep.subr.mxu0 0.0
    %97 = vmatpush1.msra.mxu0 0.0
    %98 = vmatprep.subr.mxu0 0.0
    %99 = vmatpush1.msra.mxu0 0.0
    %100 = vmatprep.subr.mxu0 0.0
    %101 = vmatpush1.msra.mxu0 0.0
    %102 = vmatprep.subr.mxu0 0.0
    %103 = vmatpush1.msra.mxu0 0.0
    %104 = vmatprep.subr.mxu0 0.0
    %105 = vmatpush1.msra.mxu0 0.0
    %106 = vmatprep.subr.mxu0 0.0
    %107 = vmatpush1.msra.mxu0 0.0
    %108 = vmatprep.subr.mxu0 0.0
    %109 = vmatpush1.msra.mxu0 0.0
    %110 = vmatprep.subr.mxu0 0.0
    %111 = vmatpush1.msra.mxu0 0.0
    %112 = vmatprep.subr.mxu0 0.0
    %113 = vmatpush1.msra.mxu0 0.0
    %114 = vmatprep.subr.mxu0 0.0
    %115 = vmatpush1.msra.mxu0 0.0
    %116 = vmatprep.subr.mxu0 0.0
    %117 = vmatpush1.msra.mxu0 0.0
    %118 = vmatprep.subr.mxu0 0.0
    %119 = vmatpush1.msra.mxu0 0.0
    %120 = vmatprep.subr.mxu0 0.0
    %121 = vmatpush1.msra.mxu0 0.0
    %122 = vmatprep.subr.mxu0 0.0
    %123 = vmatpush1.msra.mxu0 0.0
    %124 = vmatprep.subr.mxu0 0.0
    %125 = vmatpush1.msra.mxu0 0.0
    %126 = vmatprep.subr.mxu0 0.0
    %127 = vmatpush1.msra.mxu0 0.0
    %128 = vmatprep.subr.mxu0 0.0
    %129 = vmatpush1.msra.mxu0 0.0
    %130 = vmatprep.subr.mxu0 0.0
    %131 = vmatpush1.msra.mxu0 0.0
    %132 = vmatprep.subr.mxu0 0.0
    %133 = vmatpush1.msra.mxu0 0.0
    %134 = vmatprep.subr.mxu0 0.0
    %135 = vmatpush1.msra.mxu0 0.0
    %136 = vmatprep.subr.mxu0 0.0
    %137 = vmatpush1.msra.mxu0 0.0
    %138 = vmatprep.subr.mxu0 0.0
    %139 = vmatpush1.msra.mxu0 0.0
    %140 = vmatprep.subr.mxu0 0.0
    %141 = vmatpush1.msra.mxu0 0.0
    %142 = vmatprep.subr.mxu0 0.0
    %143 = vmatpush1.msra.mxu0 0.0
    %144 = vmatprep.subr.mxu0 0.0
    %145 = vmatpush1.msra.mxu0 0.0
    %146 = vmatprep.subr.mxu0 0.0
    %147 = vmatpush1.msra.mxu0 0.0
    %148 = vmatprep.subr.mxu0 0.0
    %149 = vmatpush1.msra.mxu0 0.0
    %150 = vmatprep.subr.mxu0 0.0
    %151 = vmatpush1.msra.mxu0 0.0
    %152 = vmatprep.mubr.f32.mxu0 0.0
    %153 = vmatmul.mubr.f32.gmra.mrb[0].mxu0 %v82
    %v154 = vpop.f32.mrb[0].mxu0
    %v155 = vadd.f32 %v78, %v154
    %v156 = vpop.f32.mrb[0].mxu0
    %157 = vdwg.mxu0
    %v158 = vmax.f32 %v155, 0.0
    %v159 = vpack.c.bf16 %v158, %v158
    %v160 = vld [vmem:[#allocation8] sm:$0xff]
    %v161 = vld [vmem:[#allocation8 + $0x8] sm:$0xff]
    %v162 = vld [vmem:[#allocation8 + $0x10] sm:$0xff]
    %v163 = vld [vmem:[#allocation8 + $0x18] sm:$0xff]
    %v164 = vld [vmem:[#allocation8 + $0x20] sm:$0xff]
    %v165 = vld [vmem:[#allocation8 + $0x28] sm:$0xff]
    %v166 = vld [vmem:[#allocation8 + $0x30] sm:$0xff]
    %v167 = vld [vmem:[#allocation8 + $0x38] sm:$0xff]
    %v168 = vld [vmem:[#allocation8 + $0x40] sm:$0xff]
    %v169 = vld [vmem:[#allocation8 + $0x48] sm:$0xff]
    %v170 = vld [vmem:[#allocation8 + $0x50] sm:$0xff]
    %v171 = vld [vmem:[#allocation8 + $0x58] sm:$0xff]
    %v172 = vld [vmem:[#allocation8 + $0x60] sm:$0xff]
    %v173 = vld [vmem:[#allocation8 + $0x68] sm:$0xff]
    %v174 = vld [vmem:[#allocation8 + $0x70] sm:$0xff]
    %v175 = vld [vmem:[#allocation8 + $0x78] sm:$0xff]
    %v176 = vld [vmem:[%s4] sm:$0x3]
    %v178 = vlaneseq
    %v179 = vshrl.u32 %v178, 7
    %v180 = vsub.s32 0, %v179
    %v181 = vrot.slane %v176, %v180
    %v182 = vlaneseq
    %v183 = vshrl.u32 %v182, 7
    %v184 = vsub.s32 1, %v183
    %v185 = vrot.slane %v176, %v184
    %v204 = vunpack.c.l.b16 %v160
    %v205 = vunpack.c.h.b16 %v160
    %v206 = vunpack.c.l.b16 %v161
    %v207 = vunpack.c.h.b16 %v161
    %v208 = vunpack.c.l.b16 %v162
    %v209 = vunpack.c.h.b16 %v162
    %v210 = vunpack.c.l.b16 %v163
    %v211 = vunpack.c.h.b16 %v163
    %v212 = vunpack.c.l.b16 %v164
    %v213 = vunpack.c.h.b16 %v164
    %v214 = vunpack.c.l.b16 %v165
    %v215 = vunpack.c.h.b16 %v165
    %v216 = vunpack.c.l.b16 %v166
    %v217 = vunpack.c.h.b16 %v166
    %v218 = vunpack.c.l.b16 %v167
    %v219 = vunpack.c.h.b16 %v167
    %v220 = vunpack.c.l.b16 %v168
    %v221 = vunpack.c.h.b16 %v168
    %v222 = vunpack.c.l.b16 %v169
    %v223 = vunpack.c.h.b16 %v169
    %v224 = vunpack.c.l.b16 %v170
    %v225 = vunpack.c.h.b16 %v170
    %v226 = vunpack.c.l.b16 %v171
    %v227 = vunpack.c.h.b16 %v171
    %v228 = vunpack.c.l.b16 %v172
    %v229 = vunpack.c.h.b16 %v172
    %v230 = vunpack.c.l.b16 %v173
    %v231 = vunpack.c.h.b16 %v173
    %v232 = vunpack.c.l.b16 %v174
    %v233 = vunpack.c.h.b16 %v174
    %v234 = vunpack.c.l.b16 %v175
    %v235 = vunpack.c.h.b16 %v175
    %v236 = vpack.c.b16 %v206, %v204
    %v237 = vpack.c.b16 %v207, %v205
    %v238 = vpack.c.b16 %v210, %v208
    %v239 = vpack.c.b16 %v211, %v209
    %v240 = vpack.c.b16 %v214, %v212
    %v241 = vpack.c.b16 %v215, %v213
    %v242 = vpack.c.b16 %v218, %v216
    %v243 = vpack.c.b16 %v219, %v217
    %v244 = vpack.c.b16 %v222, %v220
    %v245 = vpack.c.b16 %v223, %v221
    %v246 = vpack.c.b16 %v226, %v224
    %v247 = vpack.c.b16 %v227, %v225
    %v248 = vpack.c.b16 %v230, %v228
    %v249 = vpack.c.b16 %v231, %v229
    %v250 = vpack.c.b16 %v234, %v232
    %v251 = vpack.c.b16 %v235, %v233
    %268 = vmatprep.subr.bf16.mxu0 %v237
    %269 = vmatpush1.bf16.msra.mxu0 %v236
    %270 = vmatprep.subr.bf16.mxu0 %v239
    %271 = vmatpush1.bf16.msra.mxu0 %v238
    %272 = vmatprep.subr.bf16.mxu0 %v241
    %273 = vmatpush1.bf16.msra.mxu0 %v240
    %274 = vmatprep.subr.bf16.mxu0 %v243
    %275 = vmatpush1.bf16.msra.mxu0 %v242
    %276 = vmatprep.subr.bf16.mxu0 %v245
    %277 = vmatpush1.bf16.msra.mxu0 %v244
    %278 = vmatprep.subr.bf16.mxu0 %v247
    %279 = vmatpush1.bf16.msra.mxu0 %v246
    %280 = vmatprep.subr.bf16.mxu0 %v249
    %281 = vmatpush1.bf16.msra.mxu0 %v248
    %282 = vmatprep.subr.bf16.mxu0 %v251
    %283 = vmatpush1.bf16.msra.mxu0 %v250
    %284 = vmatprep.subr.bf16.mxu0 0
    %285 = vmatpush1.bf16.msra.mxu0 0
    %286 = vmatprep.subr.bf16.mxu0 0
    %287 = vmatpush1.bf16.msra.mxu0 0
    %288 = vmatprep.subr.bf16.mxu0 0
    %289 = vmatpush1.bf16.msra.mxu0 0
    %290 = vmatprep.subr.bf16.mxu0 0
    %291 = vmatpush1.bf16.msra.mxu0 0
    %292 = vmatprep.subr.bf16.mxu0 0
    %293 = vmatpush1.bf16.msra.mxu0 0
    %294 = vmatprep.subr.bf16.mxu0 0
    %295 = vmatpush1.bf16.msra.mxu0 0
    %296 = vmatprep.subr.bf16.mxu0 0
    %297 = vmatpush1.bf16.msra.mxu0 0
    %298 = vmatprep.subr.bf16.mxu0 0
    %299 = vmatpush1.bf16.msra.mxu0 0
    %300 = vmatprep.mubr.bf16.mxu0 0
    %301 = vmatmul.mubr.bf16.gmra.mrb[0].mxu0 %v159
    %v302 = vpop.f32.mrb[0].mxu0
    %v303 = vadd.f32 %v181, %v302
    %v304 = vpop.f32.mrb[0].mxu0
    %v305 = vadd.f32 %v185, %v304
    %v306 = vpop.f32.mrb[0].mxu0
    %v307 = vpop.f32.mrb[0].mxu0
    %308 = vdwg.mxu0
    %v309 = vmax.f32 %v303, 0.0
    %v310 = vmax.f32 %v305, 0.0
    %v311 = vld [vmem:[%s5] sm:$0x3]
    %s312 = sld [smem:[#allocation2]]
    %v313 = vstv %s312
    %v315 = vlaneseq
    %v316 = vshrl.u32 %v315, 7
    %v317 = vsub.s32 0, %v316
    %v318 = vrot.slane %v311, %v317
    %v319 = vlaneseq
    %v320 = vshrl.u32 %v319, 7
    %v321 = vsub.s32 1, %v320
    %v322 = vrot.slane %v311, %v321
    %325 = vmatprep.subr.mxu0 %v310
    %326 = vmatpush1.xpose.msra.mxu0 %v309
    %327 = vmatprep.subr.mxu0 0.0
    %328 = vmatpush1.xpose.msra.mxu0 0.0
    %329 = vmatprep.subr.mxu0 0.0
    %330 = vmatpush1.xpose.msra.mxu0 0.0
    %331 = vmatprep.subr.mxu0 0.0
    %332 = vmatpush1.xpose.msra.mxu0 0.0
    %333 = vmatprep.subr.mxu0 0.0
    %334 = vmatpush1.xpose.msra.mxu0 0.0
    %335 = vmatprep.subr.mxu0 0.0
    %336 = vmatpush1.xpose.msra.mxu0 0.0
    %337 = vmatprep.subr.mxu0 0.0
    %338 = vmatpush1.xpose.msra.mxu0 0.0
    %339 = vmatprep.subr.mxu0 0.0
    %340 = vmatpush1.xpose.msra.mxu0 0.0
    %341 = vmatprep.subr.mxu0 0.0
    %342 = vmatpush1.xpose.msra.mxu0 0.0
    %343 = vmatprep.subr.mxu0 0.0
    %344 = vmatpush1.xpose.msra.mxu0 0.0
    %345 = vmatprep.subr.mxu0 0.0
    %346 = vmatpush1.xpose.msra.mxu0 0.0
    %347 = vmatprep.subr.mxu0 0.0
    %348 = vmatpush1.xpose.msra.mxu0 0.0
    %349 = vmatprep.subr.mxu0 0.0
    %350 = vmatpush1.xpose.msra.mxu0 0.0
    %351 = vmatprep.subr.mxu0 0.0
    %352 = vmatpush1.xpose.msra.mxu0 0.0
    %353 = vmatprep.subr.mxu0 0.0
    %354 = vmatpush1.xpose.msra.mxu0 0.0
    %355 = vmatprep.subr.mxu0 0.0
    %356 = vmatpush1.xpose.msra.mxu0 0.0
    %357 = vmatprep.subr.mxu0 0.0
    %358 = vmatpush1.xpose.msra.mxu0 0.0
    %359 = vmatprep.subr.mxu0 0.0
    %360 = vmatpush1.xpose.msra.mxu0 0.0
    %361 = vmatprep.subr.mxu0 0.0
    %362 = vmatpush1.xpose.msra.mxu0 0.0
    %363 = vmatprep.subr.mxu0 0.0
    %364 = vmatpush1.xpose.msra.mxu0 0.0
    %365 = vmatprep.subr.mxu0 0.0
    %366 = vmatpush1.xpose.msra.mxu0 0.0
    %367 = vmatprep.subr.mxu0 0.0
    %368 = vmatpush1.xpose.msra.mxu0 0.0
    %369 = vmatprep.subr.mxu0 0.0
    %370 = vmatpush1.xpose.msra.mxu0 0.0
    %371 = vmatprep.subr.mxu0 0.0
    %372 = vmatpush1.xpose.msra.mxu0 0.0
    %373 = vmatprep.subr.mxu0 0.0
    %374 = vmatpush1.xpose.msra.mxu0 0.0
    %375 = vmatprep.subr.mxu0 0.0
    %376 = vmatpush1.xpose.msra.mxu0 0.0
    %377 = vmatprep.subr.mxu0 0.0
    %378 = vmatpush1.xpose.msra.mxu0 0.0
    %379 = vmatprep.subr.mxu0 0.0
    %380 = vmatpush1.xpose.msra.mxu0 0.0
    %381 = vmatprep.subr.mxu0 0.0
    %382 = vmatpush1.xpose.msra.mxu0 0.0
    %383 = vmatprep.subr.mxu0 0.0
    %384 = vmatpush1.xpose.msra.mxu0 0.0
    %385 = vmatprep.subr.mxu0 0.0
    %386 = vmatpush1.xpose.msra.mxu0 0.0
    %387 = vmatprep.subr.mxu0 0.0
    %388 = vmatpush1.xpose.msra.mxu0 0.0
    %389 = vmatprep.mubr.f32.mxu0 %v322
    %390 = vmatmul.mubr.f32.gmra.mrb[0].mxu0 %v318
    %v391 = vpop.f32.mrb[0].mxu0
    %v392 = vadd.f32 %v313, %v391
    %v393 = vpop.f32.mrb[0].mxu0
    %394 = vdwg.mxu0
    %vm395 = vcmask 57344
    %396 = vst.msk [vmem:[#allocation9] sm:$0x1] %vm395, %v392
    // Predicated region
    $region42: #{tpu_custom_call.1} parent=1 // pred_check
      _
    $region43: #{tpu_custom_call.1} parent=1 // pred_check_branch
      %398 = sbr.rel (0) target = $region45
    $region44: #{tpu_custom_call.1} parent=1 // pred_region
      %s400 = ssub.s32 16, 16
      %401 = vsyncadd [#allocation5], %s400
      %s403 = sshll.u32 [#allocation9], 4
      %s404 = int_to_ptr.vmem [resolvable:$true] %s403
      %406 = dma.vmem_to_hbm [thread:$0]  %s404, 16, %s7, [#allocation5]
    $region45: #{tpu_custom_call.1} parent=1 // pred_fallthru
      _
    // Predicated region
    $region46: #{tpu_custom_call.1} parent=1 // pred_check
      _
    $region47: #{tpu_custom_call.1} parent=1 // pred_check_branch
      %408 = sbr.rel (0) target = $region49
    $region48: #{tpu_custom_call.1} parent=1 // pred_region
      %409 = dma.done [#allocation5], 16
    $region49: #{tpu_custom_call.1} parent=1 // pred_fallthru
      _
    %410 = vsyncpa [#allocation4], 1
    %411 = vsyncpa [#allocation7], 1
    %412 = vsyncpa [#allocation5], 1

</llo_original>
